<compile_context>
chip_gen: v6e
topology: v6e:2x2x1
jax: 0.10.0
libtpu: 0.0.40
codegen_flags: <defaults>
</compile_context>

<pallas_src>
import jax
import jax.numpy as jnp
from jax.experimental import pallas as pl
from jax.experimental.pallas import tpu as pltpu


def _default_num_chunks():
    """Per-input in-flight DMA target, by TPU generation."""
    try:
        kind = jax.devices()[0].device_kind.lower()
    except Exception:
        kind = ""
    if "v7" in kind:
        return 8          # high HBM BW -> need more concurrent streams
    if "v5" in kind:
        return 2          # ~820 GB/s: two overlapping DMAs already close to roofline
    return 4              # v6e and default: modest split


def _split(total, k):
    """Split range [0, total) into k roughly equal (start, size) chunks."""
    k = max(1, min(k, total))
    base, rem = divmod(total, k)
    chunks, start = [], 0
    for i in range(k):
        sz = base + (1 if i < rem else 0)
        chunks.append((start, sz))
        start += sz
    return chunks


def _make_concat_rows_kernel(row_chunks, ca, cb):
    """n >= 2 path: chunk along rows of the (N, C*H*W) views.

    a: (N, ca), b: (N, cb), o: (N, ca + cb); all in HBM (pl.ANY).
    All DMAs are started before any wait so they overlap on the DMA engines.
    """
    def kernel(a_hbm, b_hbm, o_hbm, sem):
        copies = []
        for i, (r0, rs) in enumerate(row_chunks):
            copies.append(pltpu.make_async_copy(
                a_hbm.at[pl.ds(r0, rs), :],
                o_hbm.at[pl.ds(r0, rs), pl.ds(0, ca)],
                sem.at[0, i]))
            copies.append(pltpu.make_async_copy(
                b_hbm.at[pl.ds(r0, rs), :],
                o_hbm.at[pl.ds(r0, rs), pl.ds(ca, cb)],
                sem.at[1, i]))
        for cp in copies:
            cp.start()
        for cp in copies:
            cp.wait()
    return kernel


def _make_concat_flat_kernel(chunks_a, chunks_b, ca):
    """n == 1 path: every chunk is a fully contiguous DMA (no row stride).

    a: (1, ca), b: (1, cb), o: (1, ca + cb); all in HBM (pl.ANY).
    """
    def kernel(a_hbm, b_hbm, o_hbm, sem):
        copies = []
        for i, (s, sz) in enumerate(chunks_a):
            copies.append(pltpu.make_async_copy(
                a_hbm.at[:, pl.ds(s, sz)],
                o_hbm.at[:, pl.ds(s, sz)],
                sem.at[0, i]))
        for i, (s, sz) in enumerate(chunks_b):
            copies.append(pltpu.make_async_copy(
                b_hbm.at[:, pl.ds(s, sz)],
                o_hbm.at[:, pl.ds(ca + s, sz)],
                sem.at[1, i]))
        for cp in copies:
            cp.start()
        for cp in copies:
            cp.wait()
    return kernel


def concatenate_forward(layer_1, layer_2, *, min_pallas_bytes=1 << 20, num_chunks=None):
    """Pallas equivalent of torch.cat((layer_1, layer_2), dim=1) for NCHW tensors."""
    assert layer_1.ndim == 4 and layer_2.ndim == 4
    n, c1, h, w = layer_1.shape
    n2, c2, h2, w2 = layer_2.shape
    assert (n, h, w) == (n2, h2, w2), "non-channel dims must match"
    assert layer_1.dtype == layer_2.dtype

    itemsize = jnp.dtype(layer_1.dtype).itemsize
    total_bytes = (layer_1.size + layer_2.size) * itemsize

    # Small-tensor fallback: launch + DMA setup dominate at KiB scale, and
    # XLA's native concat can fuse into consumers.
    if total_bytes < min_pallas_bytes:
        return jnp.concatenate((layer_1, layer_2), axis=1)

    la = c1 * h * w
    lb = c2 * h * w
    row_bytes_a = la * itemsize
    row_bytes_b = lb * itemsize

    # Alignment / contiguity guard for the strided (n >= 2) destination slice:
    # tiny or unaligned per-row runs would collapse strided-DMA efficiency.
    if n >= 2 and not (row_bytes_a >= 512 and row_bytes_a % 512 == 0 and
                       row_bytes_b >= 512 and row_bytes_b % 512 == 0):
        # TODO(synk): VMEM-staged lane-dense store path for tiny/unaligned rows.
        return jnp.concatenate((layer_1, layer_2), axis=1)

    # Concurrency: number of in-flight DMAs per input, clamped so each chunk
    # stays large (avoid per-descriptor overhead, ~us each).
    k_target = num_chunks if num_chunks is not None else _default_num_chunks()
    max_by_size = max(1, total_bytes // (256 * 1024))

    # Lane-dense contiguous 2-D views (free reshapes for row-major NCHW).
    a2 = layer_1.reshape(n, la)
    b2 = layer_2.reshape(n, lb)

    if n == 1:
        k = max(1, min(k_target, max_by_size))
        chunks_a = _split(la, k)
        chunks_b = _split(lb, k)
        kernel = _make_concat_flat_kernel(chunks_a, chunks_b, la)
        sem_k = max(len(chunks_a), len(chunks_b))
    else:
        k = max(1, min(k_target, max_by_size, n))
        row_chunks = _split(n, k)
        kernel = _make_concat_rows_kernel(row_chunks, la, lb)
        sem_k = len(row_chunks)

    # Pure memory traffic: every byte is read once and written once.
    cost = pl.CostEstimate(flops=0, transcendentals=0, bytes_accessed=2 * total_bytes)

    out2 = pl.pallas_call(
        kernel,
        out_shape=jax.ShapeDtypeStruct((n, la + lb), layer_1.dtype),
        in_specs=[
            pl.BlockSpec(memory_space=pl.ANY),
            pl.BlockSpec(memory_space=pl.ANY),
        ],
        out_specs=pl.BlockSpec(memory_space=pl.ANY),
        scratch_shapes=[pltpu.SemaphoreType.DMA((2, sem_k))],
        cost_estimate=cost,
    )(a2, b2)

    return out2.reshape(n, c1 + c2, h, w)


if __name__ == "__main__":
    key = jax.random.PRNGKey(0)
    k1, k2, k3, k4, k5, k6 = jax.random.split(key, 6)

    # 1) Primary small NCHW case (forces the Pallas DMA path).
    a = jax.random.normal(k1, (2, 4, 16, 16), dtype=jnp.float32)
    b = jax.random.normal(k2, (2, 4, 16, 16), dtype=jnp.float32)
    out = jax.block_until_ready(concatenate_forward(a, b, min_pallas_bytes=0))
    ref = jnp.concatenate((a, b), axis=1)
    assert out.shape == (2, 8, 16, 16) and out.dtype == a.dtype
    assert jnp.array_equal(out, ref)

    # 2) Batch-1 case (fully contiguous DMA path).
    a1 = jax.random.normal(k3, (1, 4, 16, 16), dtype=jnp.float32)
    b1 = jax.random.normal(k4, (1, 4, 16, 16), dtype=jnp.float32)
    out1 = jax.block_until_ready(concatenate_forward(a1, b1, min_pallas_bytes=0))
    assert jnp.array_equal(out1, jnp.concatenate((a1, b1), axis=1))

    # 3) Slightly larger case that exercises multi-chunk (multiple in-flight DMAs).
    a3 = jax.random.normal(k5, (8, 8, 32, 32), dtype=jnp.float32)
    b3 = jax.random.normal(k6, (8, 8, 32, 32), dtype=jnp.float32)
    out3 = jax.block_until_ready(concatenate_forward(a3, b3, min_pallas_bytes=0))
    assert jnp.array_equal(out3, jnp.concatenate((a3, b3), axis=1))

    # 4) Default threshold -> small-tensor fallback path (still correct).
    out4 = jax.block_until_ready(concatenate_forward(a, b))
    assert jnp.array_equal(out4, ref)

    print("KERNEL_OK")
</pallas_src>

<mosaic_0001>
module attributes {stable_mosaic.version = 11 : i64} {
  func.func @kernel(%arg0: memref<2x1024xf32, #tpu.memory_space<any>>, %arg1: memref<2x1024xf32, #tpu.memory_space<any>>, %arg2: memref<2x2048xf32, #tpu.memory_space<any>>, %arg3: memref<2x1x!tpu.dma_semaphore, #tpu.memory_space<semaphore_mem>>) attributes {dimension_semantics = [], scalar_prefetch = 0 : i64, scratch_operands = 1 : i64, tpu.core_type = #tpu.core_type<tc>} {
    %c0_i32 = arith.constant 0 : i32
    %c0_i32_0 = arith.constant 0 : i32
    %c0_i32_1 = arith.constant 0 : i32
    %c0_i32_2 = arith.constant 0 : i32
    %0 = tpu.memref_slice %arg0[%c0_i32_1, %c0_i32_2] : memref<2x1024xf32, #tpu.memory_space<any>> -> memref<2x1024xf32, #tpu.memory_space<any>>
    %c0_i32_3 = arith.constant 0 : i32
    %c0_i32_4 = arith.constant 0 : i32
    %1 = tpu.memref_slice %arg2[%c0_i32_3, %c0_i32_4] : memref<2x2048xf32, #tpu.memory_space<any>> -> memref<2x1024xf32, #tpu.memory_space<any>>
    %2 = tpu.memref_slice %arg3[%c0_i32, %c0_i32_0] : memref<2x1x!tpu.dma_semaphore, #tpu.memory_space<semaphore_mem>> -> memref<1x1x!tpu.dma_semaphore, #tpu.memory_space<semaphore_mem>>
    %3 = tpu.memref_squeeze %2 : memref<1x1x!tpu.dma_semaphore, #tpu.memory_space<semaphore_mem>> -> memref<!tpu.dma_semaphore, #tpu.memory_space<semaphore_mem>>
    tpu.enqueue_dma source(%0 : memref<2x1024xf32, #tpu.memory_space<any>>) target(%1 : memref<2x1024xf32, #tpu.memory_space<any>>) target_semaphore(%3 : memref<!tpu.dma_semaphore, #tpu.memory_space<semaphore_mem>>)
    %c1_i32 = arith.constant 1 : i32
    %c0_i32_5 = arith.constant 0 : i32
    %c0_i32_6 = arith.constant 0 : i32
    %c0_i32_7 = arith.constant 0 : i32
    %4 = tpu.memref_slice %arg1[%c0_i32_6, %c0_i32_7] : memref<2x1024xf32, #tpu.memory_space<any>> -> memref<2x1024xf32, #tpu.memory_space<any>>
    %c0_i32_8 = arith.constant 0 : i32
    %c1024_i32 = arith.constant 1024 : i32
    %5 = tpu.memref_slice %arg2[%c0_i32_8, %c1024_i32] : memref<2x2048xf32, #tpu.memory_space<any>> -> memref<2x1024xf32, #tpu.memory_space<any>>
    %6 = tpu.memref_slice %arg3[%c1_i32, %c0_i32_5] : memref<2x1x!tpu.dma_semaphore, #tpu.memory_space<semaphore_mem>> -> memref<1x1x!tpu.dma_semaphore, #tpu.memory_space<semaphore_mem>>
    %7 = tpu.memref_squeeze %6 : memref<1x1x!tpu.dma_semaphore, #tpu.memory_space<semaphore_mem>> -> memref<!tpu.dma_semaphore, #tpu.memory_space<semaphore_mem>>
    tpu.enqueue_dma source(%4 : memref<2x1024xf32, #tpu.memory_space<any>>) target(%5 : memref<2x1024xf32, #tpu.memory_space<any>>) target_semaphore(%7 : memref<!tpu.dma_semaphore, #tpu.memory_space<semaphore_mem>>)
    %c0_i32_9 = arith.constant 0 : i32
    %c0_i32_10 = arith.constant 0 : i32
    %c0_i32_11 = arith.constant 0 : i32
    %c0_i32_12 = arith.constant 0 : i32
    %8 = tpu.memref_slice %arg0[%c0_i32_11, %c0_i32_12] : memref<2x1024xf32, #tpu.memory_space<any>> -> memref<2x1024xf32, #tpu.memory_space<any>>
    %c0_i32_13 = arith.constant 0 : i32
    %c0_i32_14 = arith.constant 0 : i32
    %9 = tpu.memref_slice %arg2[%c0_i32_13, %c0_i32_14] : memref<2x2048xf32, #tpu.memory_space<any>> -> memref<2x1024xf32, #tpu.memory_space<any>>
    %10 = tpu.memref_slice %arg3[%c0_i32_9, %c0_i32_10] : memref<2x1x!tpu.dma_semaphore, #tpu.memory_space<semaphore_mem>> -> memref<1x1x!tpu.dma_semaphore, #tpu.memory_space<semaphore_mem>>
    %11 = tpu.memref_squeeze %10 : memref<1x1x!tpu.dma_semaphore, #tpu.memory_space<semaphore_mem>> -> memref<!tpu.dma_semaphore, #tpu.memory_space<semaphore_mem>>
    tpu.wait_dma2 semaphore(%11 : memref<!tpu.dma_semaphore, #tpu.memory_space<semaphore_mem>>) src(%8 : memref<2x1024xf32, #tpu.memory_space<any>>) dst(%9 : memref<2x1024xf32, #tpu.memory_space<any>>)
    %c1_i32_15 = arith.constant 1 : i32
    %c0_i32_16 = arith.constant 0 : i32
    %c0_i32_17 = arith.constant 0 : i32
    %c0_i32_18 = arith.constant 0 : i32
    %12 = tpu.memref_slice %arg1[%c0_i32_17, %c0_i32_18] : memref<2x1024xf32, #tpu.memory_space<any>> -> memref<2x1024xf32, #tpu.memory_space<any>>
    %c0_i32_19 = arith.constant 0 : i32
    %c1024_i32_20 = arith.constant 1024 : i32
    %13 = tpu.memref_slice %arg2[%c0_i32_19, %c1024_i32_20] : memref<2x2048xf32, #tpu.memory_space<any>> -> memref<2x1024xf32, #tpu.memory_space<any>>
    %14 = tpu.memref_slice %arg3[%c1_i32_15, %c0_i32_16] : memref<2x1x!tpu.dma_semaphore, #tpu.memory_space<semaphore_mem>> -> memref<1x1x!tpu.dma_semaphore, #tpu.memory_space<semaphore_mem>>
    %15 = tpu.memref_squeeze %14 : memref<1x1x!tpu.dma_semaphore, #tpu.memory_space<semaphore_mem>> -> memref<!tpu.dma_semaphore, #tpu.memory_space<semaphore_mem>>
    tpu.wait_dma2 semaphore(%15 : memref<!tpu.dma_semaphore, #tpu.memory_space<semaphore_mem>>) src(%12 : memref<2x1024xf32, #tpu.memory_space<any>>) dst(%13 : memref<2x1024xf32, #tpu.memory_space<any>>)
    return
  }
}

</mosaic_0001>

<llo_original>
// kernel: tpu_custom_call.1
$region0: #{tpu_custom_call.1}
  #allocation0 [shape = 'u32[]', space=smem, size = 0x4, offset = 0x4, fixed_abs, tag = 'smem constant byte address 0x4 - core index']
  #allocation1 [shape = 'u32[144,128]{1,0:T(1,128)}', space=vmem, size = 0x12000, scoped, tag = 'internal scratch']
  #allocation2 [shape = 's32[2]{0}', space=sflag, size = 0x8, scoped, tag = 'scratch operand']
  #allocation3 [shape = 's32[]', space=sflag, size = 0x4, offset = 0, fixed_abs, tag = 'sflag constant byte address 0x0 - dummy sync flag']
  #allocation4 [shape = 'u32[0]{0}', space=smem, size = 0, offset = 0, fixed_abs, tag = 'smem constant byte address 0x0 - null']
  #allocation5 [shape = 's32[]', space=sflag, size = 0x4, offset = 0, fixed_abs, tag = 'sflag constant byte address 0x0 - dummy sync flag']
  #allocation6 [shape = 'u32[0]{0}', space=smem, size = 0, offset = 0, fixed_abs, tag = 'smem constant byte address 0x0 - null']
  %s0 = inlined_call_operand.hbm [shape: f32[2,1024], index: 0, kind: input, shape index: {}]
  %s1 = inlined_call_operand.hbm [shape: f32[2,1024], index: 1, kind: input, shape index: {}]
  %s2 = inlined_call_operand.hbm [shape: f32[2,2048], index: 2, kind: output, shape index: {}]
  %s3 = sld [smem:[#allocation0]]
  $region2: #{tpu_custom_call.1} parent=0
    _
  %s5 = ssub.s32 1, %s3
  %s6 = scalar_select 0, %s5, %s3
  %s8 = sshll.u32 1, 14
  %s9 = sxor.u32 4294967295, %s8
  %13 = dma.general %s0, 256, %s2, [#allocation2], 131072, [#allocation4], 0, 0
  %s14 = scalar_lea.hbm %s2, 256
  %s15 = scalar_lea.sflag [#allocation2], 1
  %s17 = sshll.u32 1, 14
  %s18 = sxor.u32 4294967295, %s17
  %22 = dma.general %s1, 256, %s14, %s15, 131072, [#allocation6], 0, 0
  %s23 = smul.u32 2, 1
  %s24 = smul.u32 %s23, 8
  %s25 = sshll.u32 %s24, 4
  %26 = dma.done [#allocation2], %s25
  %s27 = sshll.u32 %s24, 4
  %28 = dma.done %s15, %s27
  %29 = vsyncmov [#allocation2]
  %s30 = vpop.sfrf %29
  %p31 = scmp.eq.s32.totalorder %s30, 0
  %p32 = pneg %p31
  %34 = shalt.err (%p32)
  %s35 = scalar_lea.sflag [#allocation2], 1
  %36 = vsyncmov %s35
  %s37 = vpop.sfrf %36
  %p38 = scmp.eq.s32.totalorder %s37, 0
  %p39 = pneg %p38
  %41 = shalt.err (%p39)

</llo_original>
